<compile_context>
chip_gen: v5e
topology: v5e:2x2
jax: 0.10.0
libtpu: 0.0.40
codegen_flags: <defaults>
</compile_context>

<pallas_src>
import jax
import jax.numpy as jnp
from jax.experimental import pallas as pl
from jax.experimental.pallas import tpu as pltpu


def _e2e_kernel(x_ref, w1r_ref, w2f_ref, bias_ref, out_ref):
    # x_ref   : (nb, C, d, d)  natural NCHW block: x_ref[n, c, i, k] = x[n, c, i, k]
    # w1r_ref : (C, P, d)      w1r[c, p, k] = w1[p, c, 0, k]
    # w2f_ref : (P, C*d)       w2f[p, c*d+k] = w2[p, c, k, 0]
    # bias_ref: (P, 1)         b1 + b2
    # out_ref : (nb, P, d*d)   lane-dense NCHW output block
    nb, c, d, _ = x_ref.shape

    w1r = w1r_ref[...]                     # (C, P, d)
    w2f = w2f_ref[...]                     # (P, C*d)
    bias = bias_ref[...]                   # (P, 1)

    # Static unroll over the (small) per-step batch slice.
    for n in range(nb):
        x3 = x_ref[n]                      # (C, d, d): x3[c, i, k] = x[n, c, i, k]

        # cnn1 term: aT[p, i] = sum_{c,k} w1[p,c,0,k] * x[n,c,i,k]
        # C-batched MXU dot (contract the last dims), then reduce over c.
        a_c = jax.lax.dot_general(
            w1r, x3,
            dimension_numbers=(((2,), (2,)), ((0,), (0,))),
            preferred_element_type=jnp.float32)            # (C, P, d)
        a_t = jnp.sum(a_c, axis=0) + bias                  # (P, d), bias folded here

        # cnn2 term: bT[p, j] = sum_{c,k} w2[p,c,k,0] * x[n,c,k,j]
        # (C, d, d) -> (C*d, d) is a sublane-only merge (lane dim unchanged): free.
        b_t = jnp.dot(w2f, x3.reshape(c * d, d),
                      preferred_element_type=jnp.float32)  # (P, d)

        # Lane-dense assembly: out[p, i*d + j] = aT[p, i] + bT[p, j] (+ bias).
        # Exact VPU adds + minor-dim concat; the resulting (P, d*d) value is
        # stored with full-width (unmasked) vector stores.
        out_n = jnp.concatenate(
            [a_t[:, i:i + 1] + b_t for i in range(d)], axis=1)   # (P, d*d)
        out_ref[n] = out_n.astype(out_ref.dtype)


def prepare_e2e_params(w1, b1, w2, b2):
    """One-time weight rearrangement — hoist this out of the per-call hot path.

    w1: (P, C, 1, d), b1: (P,), w2: (P, C, d, 1), b2: (P,)
    """
    P, C, _, d = w1.shape
    w1r = jnp.transpose(w1[:, :, 0, :], (1, 0, 2))      # (C, P, d)
    w2f = jnp.reshape(w2[:, :, :, 0], (P, C * d))       # (P, C*d)
    bias = (b1 + b2).reshape(P, 1).astype(w1.dtype)     # (P, 1)
    return w1r, w2f, bias


def e2e_block_apply(params, x, *, batch_block=1):
    """Pallas E2EBlock forward with pre-arranged params.

    x: (N, C, d, d) float32 NCHW.  Returns (N, P, d, d) (PyTorch layout).
    batch_block: batch elements folded per grid step (amortizes step overhead
    for large N; keep N // batch_block >= 2 on v7x so both TCs are used).
    """
    N, C, d, d2 = x.shape
    assert d == d2, "E2EBlock expects square (roi_num x roi_num) input"
    w1r, w2f, bias = params
    P = w2f.shape[0]
    assert N % batch_block == 0, "batch_block must divide N"
    nb = batch_block

    out_flat = pl.pallas_call(
        _e2e_kernel,
        out_shape=jax.ShapeDtypeStruct((N, P, d * d), x.dtype),
        grid_spec=pltpu.PrefetchScalarGridSpec(
            num_scalar_prefetch=0,
            grid=(N // nb,),
            in_specs=[
                # x passed once, natural NCHW — no duplicated slabs, no transposes.
                pl.BlockSpec((nb, C, d, d), lambda n: (n, 0, 0, 0)),
                pl.BlockSpec((C, P, d), lambda n: (0, 0, 0)),
                pl.BlockSpec((P, C * d), lambda n: (0, 0)),
                pl.BlockSpec((P, 1), lambda n: (0, 0)),
            ],
            # Lane-dense NCHW output block: last dim d*d (multiple of 128 here).
            out_specs=pl.BlockSpec((nb, P, d * d), lambda n: (n, 0, 0)),
        ),
        compiler_params=pltpu.CompilerParams(
            dimension_semantics=("parallel",)),
    )(x, w1r, w2f, bias)

    # Row-major (N, P, d*d) == (N, P, d, d): this reshape is free (no transpose).
    return out_flat.reshape(N, P, d, d)


def e2e_block(x, w1, b1, w2, b2, *, batch_block=1):
    """Convenience wrapper: prepare params + apply."""
    return e2e_block_apply(prepare_e2e_params(w1, b1, w2, b2), x,
                           batch_block=batch_block)


def e2e_block_ref(x, w1, b1, w2, b2):
    """Pure-JAX reference matching the PyTorch forward."""
    # a[n,p,i] = sum_{c,j} x[n,c,i,j] * w1[p,c,0,j] + b1[p]
    a = jnp.einsum("ncij,pcj->npi", x, w1[:, :, 0, :]) + b1[None, :, None]
    # b[n,p,j] = sum_{c,i} x[n,c,i,j] * w2[p,c,i,0] + b2[p]
    b = jnp.einsum("ncij,pci->npj", x, w2[:, :, :, 0]) + b2[None, :, None]
    return a[:, :, :, None] + b[:, :, None, :]


if __name__ == "__main__":
    # Small shapes consistent with E2EBlock(in_planes=4, planes=8, roi_num=16)
    N, C, P, d = 2, 4, 8, 16

    key = jax.random.PRNGKey(0)
    kx, kw1, kb1, kw2, kb2 = jax.random.split(key, 5)

    x = jax.random.normal(kx, (N, C, d, d), dtype=jnp.float32)
    # Conv2d parameter shapes: (out, in, kH, kW)
    w1 = jax.random.normal(kw1, (P, C, 1, d), dtype=jnp.float32) * 0.1
    b1 = jax.random.normal(kb1, (P,), dtype=jnp.float32) * 0.1
    w2 = jax.random.normal(kw2, (P, C, d, 1), dtype=jnp.float32) * 0.1
    b2 = jax.random.normal(kb2, (P,), dtype=jnp.float32) * 0.1

    # Params prepared once (hoisted), reused across forward calls.
    params = prepare_e2e_params(w1, b1, w2, b2)

    out = jax.block_until_ready(e2e_block_apply(params, x))
    ref = jax.block_until_ready(e2e_block_ref(x, w1, b1, w2, b2))

    assert out.shape == (N, P, d, d), out.shape
    assert jnp.allclose(out, ref, atol=1e-4, rtol=1e-4), float(
        jnp.max(jnp.abs(out - ref)))

    # Batch-folding path: 2 batch elements per grid step (amortizes the
    # ~0.35us per-step overhead when N is large).
    out2 = jax.block_until_ready(e2e_block_apply(params, x, batch_block=2))
    assert jnp.allclose(out2, ref, atol=1e-4, rtol=1e-4), float(
        jnp.max(jnp.abs(out2 - ref)))

    print("KERNEL_OK")
</pallas_src>

<mosaic_0001>
module attributes {stable_mosaic.version = 11 : i64} {
  func.func @_e2e_kernel(%arg0: i32, %arg1: memref<1x4x16x16xf32, #tpu.memory_space<vmem>>, %arg2: memref<4x8x16xf32, #tpu.memory_space<vmem>>, %arg3: memref<8x64xf32, #tpu.memory_space<vmem>>, %arg4: memref<8x1xf32, #tpu.memory_space<vmem>>, %arg5: memref<1x8x256xf32, #tpu.memory_space<vmem>>) attributes {dimension_semantics = [#tpu.dimension_semantics<parallel>], iteration_bounds = array<i64: 2>, scalar_prefetch = 0 : i64, scratch_operands = 0 : i64, tpu.core_type = #tpu.core_type<tc>, window_params = [{transform_indices = @transform_0, window_bounds = array<i64: 1, 4, 16, 16>}, {pipeline_mode = #tpu.pipeline_mode<synchronous>, transform_indices = @transform_1, window_bounds = array<i64: 4, 8, 16>}, {pipeline_mode = #tpu.pipeline_mode<synchronous>, transform_indices = @transform_2, window_bounds = array<i64: 8, 64>}, {pipeline_mode = #tpu.pipeline_mode<synchronous>, transform_indices = @transform_3, window_bounds = array<i64: 8, 1>}, {transform_indices = @transform_4, window_bounds = array<i64: 1, 8, 256>}]} {
    %c0 = arith.constant 0 : index
    %c0_0 = arith.constant 0 : index
    %c0_1 = arith.constant 0 : index
    %0 = vector.load %arg2[%c0, %c0_0, %c0_1] : memref<4x8x16xf32, #tpu.memory_space<vmem>>, vector<4x8x16xf32>
    %c0_2 = arith.constant 0 : index
    %c0_3 = arith.constant 0 : index
    %1 = vector.load %arg3[%c0_2, %c0_3] : memref<8x64xf32, #tpu.memory_space<vmem>>, vector<8x64xf32>
    %c0_4 = arith.constant 0 : index
    %c0_5 = arith.constant 0 : index
    %2 = vector.load %arg4[%c0_4, %c0_5] : memref<8x1xf32, #tpu.memory_space<vmem>>, vector<8x1xf32>
    %c0_6 = arith.constant 0 : index
    %c0_7 = arith.constant 0 : index
    %c0_8 = arith.constant 0 : index
    %c0_9 = arith.constant 0 : index
    %3 = vector.load %arg1[%c0_6, %c0_7, %c0_8, %c0_9] : memref<1x4x16x16xf32, #tpu.memory_space<vmem>>, vector<1x4x16x16xf32>
    %4 = vector.shape_cast %3 : vector<1x4x16x16xf32> to vector<4x16x16xf32>
    %cst = arith.constant dense<0.000000e+00> : vector<4x8x16xf32>
    %5 = tpu.matmul %0, %4, %cst {dimension_numbers = #tpu.dot_dimension_numbers<[2], [2], [1], [1], [0, 0, 0, 1, 1, 1], [0], [0]>} : vector<4x8x16xf32>, vector<4x16x16xf32>, vector<4x8x16xf32> -> vector<4x8x16xf32>
    %cst_10 = arith.constant dense<0.000000e+00> : vector<8x16xf32>
    %6 = vector.multi_reduction <add>, %5, %cst_10 [0] : vector<4x8x16xf32> to vector<8x16xf32>
    %7 = vector.broadcast %2 : vector<8x1xf32> to vector<8x16xf32>
    %8 = arith.addf %6, %7 : vector<8x16xf32>
    %9 = vector.shape_cast %4 : vector<4x16x16xf32> to vector<64x16xf32>
    %cst_11 = arith.constant dense<0.000000e+00> : vector<8x16xf32>
    %10 = tpu.matmul %1, %9, %cst_11 {dimension_numbers = #tpu.dot_dimension_numbers<[1], [0], [0], [1], [0, 0, 1, 1], [], []>} : vector<8x64xf32>, vector<64x16xf32>, vector<8x16xf32> -> vector<8x16xf32>
    %11 = vector.extract_strided_slice %8 {offsets = [0, 0], sizes = [8, 1], strides = [1, 1]} : vector<8x16xf32> to vector<8x1xf32>
    %12 = vector.broadcast %11 : vector<8x1xf32> to vector<8x16xf32>
    %13 = arith.addf %12, %10 : vector<8x16xf32>
    %14 = vector.extract_strided_slice %8 {offsets = [0, 1], sizes = [8, 1], strides = [1, 1]} : vector<8x16xf32> to vector<8x1xf32>
    %15 = vector.broadcast %14 : vector<8x1xf32> to vector<8x16xf32>
    %16 = arith.addf %15, %10 : vector<8x16xf32>
    %17 = vector.extract_strided_slice %8 {offsets = [0, 2], sizes = [8, 1], strides = [1, 1]} : vector<8x16xf32> to vector<8x1xf32>
    %18 = vector.broadcast %17 : vector<8x1xf32> to vector<8x16xf32>
    %19 = arith.addf %18, %10 : vector<8x16xf32>
    %20 = vector.extract_strided_slice %8 {offsets = [0, 3], sizes = [8, 1], strides = [1, 1]} : vector<8x16xf32> to vector<8x1xf32>
    %21 = vector.broadcast %20 : vector<8x1xf32> to vector<8x16xf32>
    %22 = arith.addf %21, %10 : vector<8x16xf32>
    %23 = vector.extract_strided_slice %8 {offsets = [0, 4], sizes = [8, 1], strides = [1, 1]} : vector<8x16xf32> to vector<8x1xf32>
    %24 = vector.broadcast %23 : vector<8x1xf32> to vector<8x16xf32>
    %25 = arith.addf %24, %10 : vector<8x16xf32>
    %26 = vector.extract_strided_slice %8 {offsets = [0, 5], sizes = [8, 1], strides = [1, 1]} : vector<8x16xf32> to vector<8x1xf32>
    %27 = vector.broadcast %26 : vector<8x1xf32> to vector<8x16xf32>
    %28 = arith.addf %27, %10 : vector<8x16xf32>
    %29 = vector.extract_strided_slice %8 {offsets = [0, 6], sizes = [8, 1], strides = [1, 1]} : vector<8x16xf32> to vector<8x1xf32>
    %30 = vector.broadcast %29 : vector<8x1xf32> to vector<8x16xf32>
    %31 = arith.addf %30, %10 : vector<8x16xf32>
    %32 = vector.extract_strided_slice %8 {offsets = [0, 7], sizes = [8, 1], strides = [1, 1]} : vector<8x16xf32> to vector<8x1xf32>
    %33 = vector.broadcast %32 : vector<8x1xf32> to vector<8x16xf32>
    %34 = arith.addf %33, %10 : vector<8x16xf32>
    %35 = vector.extract_strided_slice %8 {offsets = [0, 8], sizes = [8, 1], strides = [1, 1]} : vector<8x16xf32> to vector<8x1xf32>
    %36 = vector.broadcast %35 : vector<8x1xf32> to vector<8x16xf32>
    %37 = arith.addf %36, %10 : vector<8x16xf32>
    %38 = vector.extract_strided_slice %8 {offsets = [0, 9], sizes = [8, 1], strides = [1, 1]} : vector<8x16xf32> to vector<8x1xf32>
    %39 = vector.broadcast %38 : vector<8x1xf32> to vector<8x16xf32>
    %40 = arith.addf %39, %10 : vector<8x16xf32>
    %41 = vector.extract_strided_slice %8 {offsets = [0, 10], sizes = [8, 1], strides = [1, 1]} : vector<8x16xf32> to vector<8x1xf32>
    %42 = vector.broadcast %41 : vector<8x1xf32> to vector<8x16xf32>
    %43 = arith.addf %42, %10 : vector<8x16xf32>
    %44 = vector.extract_strided_slice %8 {offsets = [0, 11], sizes = [8, 1], strides = [1, 1]} : vector<8x16xf32> to vector<8x1xf32>
    %45 = vector.broadcast %44 : vector<8x1xf32> to vector<8x16xf32>
    %46 = arith.addf %45, %10 : vector<8x16xf32>
    %47 = vector.extract_strided_slice %8 {offsets = [0, 12], sizes = [8, 1], strides = [1, 1]} : vector<8x16xf32> to vector<8x1xf32>
    %48 = vector.broadcast %47 : vector<8x1xf32> to vector<8x16xf32>
    %49 = arith.addf %48, %10 : vector<8x16xf32>
    %50 = vector.extract_strided_slice %8 {offsets = [0, 13], sizes = [8, 1], strides = [1, 1]} : vector<8x16xf32> to vector<8x1xf32>
    %51 = vector.broadcast %50 : vector<8x1xf32> to vector<8x16xf32>
    %52 = arith.addf %51, %10 : vector<8x16xf32>
    %53 = vector.extract_strided_slice %8 {offsets = [0, 14], sizes = [8, 1], strides = [1, 1]} : vector<8x16xf32> to vector<8x1xf32>
    %54 = vector.broadcast %53 : vector<8x1xf32> to vector<8x16xf32>
    %55 = arith.addf %54, %10 : vector<8x16xf32>
    %56 = vector.extract_strided_slice %8 {offsets = [0, 15], sizes = [8, 1], strides = [1, 1]} : vector<8x16xf32> to vector<8x1xf32>
    %57 = vector.broadcast %56 : vector<8x1xf32> to vector<8x16xf32>
    %58 = arith.addf %57, %10 : vector<8x16xf32>
    %59 = tpu.concatenate %13, %16, %19, %22, %25, %28, %31, %34, %37, %40, %43, %46, %49, %52, %55, %58 in 1 : vector<8x16xf32>, vector<8x16xf32>, vector<8x16xf32>, vector<8x16xf32>, vector<8x16xf32>, vector<8x16xf32>, vector<8x16xf32>, vector<8x16xf32>, vector<8x16xf32>, vector<8x16xf32>, vector<8x16xf32>, vector<8x16xf32>, vector<8x16xf32>, vector<8x16xf32>, vector<8x16xf32>, vector<8x16xf32> -> vector<8x256xf32>
    %c0_12 = arith.constant 0 : index
    %c0_13 = arith.constant 0 : index
    %c0_14 = arith.constant 0 : index
    %60 = vector.load %arg5[%c0_12, %c0_13, %c0_14] : memref<1x8x256xf32, #tpu.memory_space<vmem>>, vector<1x8x256xf32>
    %61 = vector.shape_cast %60 : vector<1x8x256xf32> to vector<8x256xf32>
    %62 = vector.shape_cast %59 : vector<8x256xf32> to vector<1x8x256xf32>
    tpu.vector_store %arg5[%c0_12, %c0_13, %c0_14], %62 {strides = array<i32>} : memref<1x8x256xf32, #tpu.memory_space<vmem>>, vector<1x8x256xf32>,
    return
  }
  func.func @transform_0(%arg0: i32) -> (i32, i32, i32, i32) {
    %c0_i32 = arith.constant 0 : i32
    %c0_i32_0 = arith.constant 0 : i32
    %c0_i32_1 = arith.constant 0 : i32
    %c0_i32_2 = arith.constant 0 : i32
    return %arg0, %c0_i32, %c0_i32_0, %c0_i32_1 : i32, i32, i32, i32
  }
  func.func @transform_1(%arg0: i32) -> (i32, i32, i32) {
    %c0_i32 = arith.constant 0 : i32
    %c0_i32_0 = arith.constant 0 : i32
    %c0_i32_1 = arith.constant 0 : i32
    %c0_i32_2 = arith.constant 0 : i32
    return %c0_i32, %c0_i32_0, %c0_i32_1 : i32, i32, i32
  }
  func.func @transform_2(%arg0: i32) -> (i32, i32) {
    %c0_i32 = arith.constant 0 : i32
    %c0_i32_0 = arith.constant 0 : i32
    %c0_i32_1 = arith.constant 0 : i32
    return %c0_i32, %c0_i32_0 : i32, i32
  }
  func.func @transform_3(%arg0: i32) -> (i32, i32) {
    %c0_i32 = arith.constant 0 : i32
    %c0_i32_0 = arith.constant 0 : i32
    %c0_i32_1 = arith.constant 0 : i32
    return %c0_i32, %c0_i32_0 : i32, i32
  }
  func.func @transform_4(%arg0: i32) -> (i32, i32, i32) {
    %c0_i32 = arith.constant 0 : i32
    %c0_i32_0 = arith.constant 0 : i32
    %c0_i32_1 = arith.constant 0 : i32
    return %arg0, %c0_i32, %c0_i32_0 : i32, i32, i32
  }
}

</mosaic_0001>

<llo_original>
// kernel: tpu_custom_call.1
$region0: #{tpu_custom_call.1}
  #allocation0 [shape = 'u32[]', space=smem, size = 0x4, offset = 0x4, fixed_abs, tag = 'smem constant byte address 0x4 - core index']
  #allocation1 [shape = 'u32[72,128]{1,0:T(1,128)}', space=vmem, size = 0x9000, scoped, tag = 'internal scratch']
  %s0 = inlined_call_operand.hbm [shape: f32[2,4,16,16], index: 0, kind: input, shape index: {}]
  %s1 = inlined_call_operand.hbm [shape: f32[4,8,16], index: 1, kind: input, shape index: {}]
  %s2 = inlined_call_operand.vmem [shape: f32[8,64], index: 2, kind: input, shape index: {}]
  %s3 = inlined_call_operand.vmem [shape: f32[8,1], index: 3, kind: input, shape index: {}]
  %s4 = inlined_call_operand.hbm [shape: f32[2,8,256], index: 4, kind: output, shape index: {}]
  %s5 = sld [smem:[#allocation0]]
  $region57: #{tpu_custom_call.1} parent=0
    _
  %s7 = ssub.s32 1, %s5
  %s8 = scalar_select 0, %s7, %s5
  $region1: #{tpu_custom_call.1} parent=0
    #allocation2 [shape = 'u8[65536]{0}', space=vmem, size = 0x10000, scoped, tag = 'input window, operand 0']
    #allocation3 [shape = 's32[2]{0}', space=sflag, size = 0x8, scoped, tag = 'scoped memory for tpu_custom_call.1']
    #allocation4 [shape = 's32[2]{0}', space=sflag, size = 0x8, scoped, tag = 'scoped memory for tpu_custom_call.1']
    #allocation5 [shape = 'u8[16384]{0}', space=vmem, size = 0x4000, scoped, tag = 'input window, operand 1, single buffered']
    #allocation6 [shape = 's32[1]{0}', space=sflag, size = 0x4, scoped, tag = 'scoped memory for tpu_custom_call.1']
    #allocation7 [shape = 'u8[16384]{0}', space=vmem, size = 0x4000, scoped, tag = 'output window, operand 0']
    %9 = vsyncpa [#allocation3], 0
    %s10 = scalar_lea.sflag [#allocation3], 1
    %11 = vsyncpa %s10, 0
    %12 = vsyncpa [#allocation6], 0
    %13 = vsyncpa [#allocation4], 0
    %s14 = scalar_lea.sflag [#allocation4], 1
    %15 = vsyncpa %s14, 0
    loop: start=0, step=1, limit=4
    $region2: #{tpu_custom_call.1} parent=1 // loop_pre_header
      _
    $region3: #{tpu_custom_call.1} parent=1 // loop_header
      %s17 = sphi 0, %s21
      %p18 = scmp.ge.s32.totalorder %s17, 4
      %s27 = sphi 0, %s29
      %s30 = sphi 0, %s27
      %s31 = sphi 0, %s30
      %s47 = sphi 0, %s31
      %s51 = sphi 0, %s51
      %s53 = sphi 0, %s51
      %s54 = sphi 0, %s53
      %s68 = sphi 0, %s54
      %s72 = sphi 0, %s72
      %s74 = sphi 0, %s72
      %s75 = sphi 0, %s74
      %s89 = sphi 0, %s75
      %s93 = sphi 0, %s93
      %s95 = sphi 0, %s93
      %s96 = sphi 0, %s95
      %s110 = sphi 0, %s96
      %s116 = sphi 0, %s118
      %s119 = sphi 0, %s116
      %s120 = sphi 0, %s119
      %s136 = sphi 0, %s120
    $region4: #{tpu_custom_call.1} parent=1 // loop_header_branch
      %20 = sbr.rel (%p18) target = $region8
    $region5: #{tpu_custom_call.1} parent=1 // loop_body
      %s22 = ssub.s32 %s17, 1
      %s23 = ssub.s32 %s17, 2
      %s24 = sadd.s32 %s17, 1
      %s25 = ssub.s32 %s17, %s24
      %p26 = scmp.eq.s32.totalorder %s25, 0
      %s28 = sadd.s32 %s27, 1
      %s29 = scalar_select %p26, %s27, %s28
      %p32 = pneg %p26
      %p33 = scmp.eq.s32.totalorder %s17, 1
      %p34 = por %p32, %p33
      %p35 = scmp.ne.s32.totalorder %s27, %s30
      %p36 = scmp.eq.s32.totalorder %s17, 0
      %p37 = por %p35, %p36
      %p38 = scmp.ne.s32.totalorder %s27, %s30
      %p39 = scmp.eq.s32.totalorder %s22, 1
      %p40 = por %p38, %p39
      %p41 = scmp.ne.s32.totalorder %s30, %s31
      %p42 = scmp.eq.s32.totalorder %s22, 0
      %p43 = por %p41, %p42
      %p44 = scmp.ne.s32.totalorder %s30, %s31
      %p45 = scmp.eq.s32.totalorder %s23, 1
      %p46 = por %p44, %p45
      %p48 = scmp.ne.s32.totalorder %s31, %s47
      %p49 = scmp.eq.s32.totalorder %s23, 0
      %p50 = por %p48, %p49
      %s52 = sadd.s32 %s51, 1
      %p55 = scmp.eq.s32.totalorder %s17, 1
      %p56 = scmp.ne.s32.totalorder %s51, %s53
      %p57 = scmp.eq.s32.totalorder %s17, 0
      %p58 = por %p56, %p57
      %p59 = scmp.ne.s32.totalorder %s51, %s53
      %p60 = scmp.eq.s32.totalorder %s22, 1
      %p61 = por %p59, %p60
      %p62 = scmp.ne.s32.totalorder %s53, %s54
      %p63 = scmp.eq.s32.totalorder %s22, 0
      %p64 = por %p62, %p63
      %p65 = scmp.ne.s32.totalorder %s53, %s54
      %p66 = scmp.eq.s32.totalorder %s23, 1
      %p67 = por %p65, %p66
      %p69 = scmp.ne.s32.totalorder %s54, %s68
      %p70 = scmp.eq.s32.totalorder %s23, 0
      %p71 = por %p69, %p70
      %s73 = sadd.s32 %s72, 1
      %p76 = scmp.eq.s32.totalorder %s17, 1
      %p77 = scmp.ne.s32.totalorder %s72, %s74
      %p78 = scmp.eq.s32.totalorder %s17, 0
      %p79 = por %p77, %p78
      %p80 = scmp.ne.s32.totalorder %s72, %s74
      %p81 = scmp.eq.s32.totalorder %s22, 1
      %p82 = por %p80, %p81
      %p83 = scmp.ne.s32.totalorder %s74, %s75
      %p84 = scmp.eq.s32.totalorder %s22, 0
      %p85 = por %p83, %p84
      %p86 = scmp.ne.s32.totalorder %s74, %s75
      %p87 = scmp.eq.s32.totalorder %s23, 1
      %p88 = por %p86, %p87
      %p90 = scmp.ne.s32.totalorder %s75, %s89
      %p91 = scmp.eq.s32.totalorder %s23, 0
      %p92 = por %p90, %p91
      %s94 = sadd.s32 %s93, 1
      %p97 = scmp.eq.s32.totalorder %s17, 1
      %p98 = scmp.ne.s32.totalorder %s93, %s95
      %p99 = scmp.eq.s32.totalorder %s17, 0
      %p100 = por %p98, %p99
      %p101 = scmp.ne.s32.totalorder %s93, %s95
      %p102 = scmp.eq.s32.totalorder %s22, 1
      %p103 = por %p101, %p102
      %p104 = scmp.ne.s32.totalorder %s95, %s96
      %p105 = scmp.eq.s32.totalorder %s22, 0
      %p106 = por %p104, %p105
      %p107 = scmp.ne.s32.totalorder %s95, %s96
      %p108 = scmp.eq.s32.totalorder %s23, 1
      %p109 = por %p107, %p108
      %p111 = scmp.ne.s32.totalorder %s96, %s110
      %p112 = scmp.eq.s32.totalorder %s23, 0
      %p113 = por %p111, %p112
      %s114 = ssub.s32 %s17, %s24
      %p115 = scmp.eq.s32.totalorder %s114, 0
      %s117 = sadd.s32 %s116, 1
      %s118 = scalar_select %p115, %s116, %s117
      %p121 = pneg %p115
      %p122 = scmp.eq.s32.totalorder %s17, 1
      %p123 = por %p121, %p122
      %p124 = scmp.ne.s32.totalorder %s116, %s119
      %p125 = scmp.eq.s32.totalorder %s17, 0
      %p126 = por %p124, %p125
      %p127 = scmp.ne.s32.totalorder %s116, %s119
      %p128 = scmp.eq.s32.totalorder %s22, 1
      %p129 = por %p127, %p128
      %p130 = scmp.ne.s32.totalorder %s119, %s120
      %p131 = scmp.eq.s32.totalorder %s22, 0
      %p132 = por %p130, %p131
      %p133 = scmp.ne.s32.totalorder %s119, %s120
      %p134 = scmp.eq.s32.totalorder %s23, 1
      %p135 = por %p133, %p134
      %p137 = scmp.ne.s32.totalorder %s120, %s136
      %p138 = scmp.eq.s32.totalorder %s23, 0
      %p139 = por %p137, %p138
      %p140 = scmp.le.s32.totalorder 1, %s17
      %p141 = scmp.lt.s32.totalorder %s17, 3
      %p142 = pnand %p140, %p141
      %p143 = pneg %p142
      // Predicated region
      $region9: #{tpu_custom_call.1} parent=5 // pred_check
        _
      $region10: #{tpu_custom_call.1} parent=5 // pred_check_branch
        %145 = sbr.rel (%p142) target = $region12
      $region11: #{tpu_custom_call.1} parent=5 // pred_region
        %s146 = ssub.s32 %s17, 1
        // Predicated region
        $region13: #{tpu_custom_call.1} parent=11 // pred_check
          %p147 = pneg %p64
        $region14: #{tpu_custom_call.1} parent=11 // pred_check_branch
          %149 = sbr.rel (%p147) target = $region16
        $region15: #{tpu_custom_call.1} parent=11 // pred_region
          %151 = vsyncadd [#allocation6], 0
          %s152 = sshll.u32 %s1, 4
          %s153 = int_to_ptr.hbm [resolvable:$true] %s152
          %s154 = sshll.u32 [#allocation5], 4
          %s155 = int_to_ptr.vmem [resolvable:$true] %s154
          %160 = dma.hbm_to_vmem [thread:$0]  %s153, 512, %s155, [#allocation6], 128, 128, 8
        $region16: #{tpu_custom_call.1} parent=11 // pred_fallthru
          _
        // Predicated region
        $region17: #{tpu_custom_call.1} parent=11 // pred_check
          %p161 = pneg %p85
        $region18: #{tpu_custom_call.1} parent=11 // pred_check_branch
          %163 = sbr.rel (%p161) target = $region20
        $region19: #{tpu_custom_call.1} parent=11 // pred_region
          _
        $region20: #{tpu_custom_call.1} parent=11 // pred_fallthru
          _
        // Predicated region
        $region21: #{tpu_custom_call.1} parent=11 // pred_check
          %p164 = pneg %p106
        $region22: #{tpu_custom_call.1} parent=11 // pred_check_branch
          %166 = sbr.rel (%p164) target = $region24
        $region23: #{tpu_custom_call.1} parent=11 // pred_region
          _
        $region24: #{tpu_custom_call.1} parent=11 // pred_fallthru
          _
      $region12: #{tpu_custom_call.1} parent=5 // pred_fallthru
        _
      %p167 = scmp.lt.s32.totalorder %s17, 2
      // Predicated region
      $region25: #{tpu_custom_call.1} parent=5 // pred_check
        %p168 = pneg %p167
      $region26: #{tpu_custom_call.1} parent=5 // pred_check_branch
        %170 = sbr.rel (%p168) target = $region28
      $region27: #{tpu_custom_call.1} parent=5 // pred_region
        // Predicated region
        $region29: #{tpu_custom_call.1} parent=27 // pred_check
          %p171 = pneg %p37
        $region30: #{tpu_custom_call.1} parent=27 // pred_check_branch
          %173 = sbr.rel (%p171) target = $region32
        $region31: #{tpu_custom_call.1} parent=27 // pred_region
          %s174 = sand.u32 %s27, 1
          %s175 = scalar_lea.sflag [#allocation3], %s174
          %s176 = sand.u32 %s27, 1
          %s177 = smul.addr %s176, 64
          %s178 = scalar_lea.vmem [#allocation2], %s177
          %180 = vsyncadd %s175, 0
          %s181 = smul.addr %s17, 8
          %s182 = smul.addr %s181, 8
          %s183 = scalar_lea.hbm %s0, %s182
          %s184 = sshll.u32 %s183, 4
          %s185 = int_to_ptr.hbm [resolvable:$true] %s184
          %s186 = sshll.u32 %s178, 4
          %s187 = int_to_ptr.vmem [resolvable:$true] %s186
          %192 = dma.hbm_to_vmem [thread:$0]  %s185, 1024, %s187, %s175, 128, 128, 8
        $region32: #{tpu_custom_call.1} parent=27 // pred_fallthru
          _
      $region28: #{tpu_custom_call.1} parent=5 // pred_fallthru
        _
      %p193 = scmp.le.s32.totalorder 1, %s17
      %p194 = scmp.lt.s32.totalorder %s17, 3
      %p195 = pnand %p193, %p194
      %p196 = pneg %p195
      // Predicated region
      $region33: #{tpu_custom_call.1} parent=5 // pred_check
        _
      $region34: #{tpu_custom_call.1} parent=5 // pred_check_branch
        %198 = sbr.rel (%p195) target = $region36
      $region35: #{tpu_custom_call.1} parent=5 // pred_region
        %s199 = ssub.s32 %s17, 1
        %s200 = sand.u32 %s30, 1
        %s201 = scalar_lea.sflag [#allocation3], %s200
        %s202 = sand.u32 %s30, 1
        %s203 = smul.addr %s202, 64
        %s204 = scalar_lea.vmem [#allocation2], %s203
        // Predicated region
        $region37: #{tpu_custom_call.1} parent=35 // pred_check
          %p205 = pneg %p43
        $region38: #{tpu_custom_call.1} parent=35 // pred_check_branch
          %207 = sbr.rel (%p205) target = $region40
        $region39: #{tpu_custom_call.1} parent=35 // pred_region
          %209 = dma.done %s201, 1024
        $region40: #{tpu_custom_call.1} parent=35 // pred_fallthru
          _
        // Predicated region
        $region41: #{tpu_custom_call.1} parent=35 // pred_check
          %p210 = pneg %p64
        $region42: #{tpu_custom_call.1} parent=35 // pred_check_branch
          %212 = sbr.rel (%p210) target = $region44
        $region43: #{tpu_custom_call.1} parent=35 // pred_region
          %214 = dma.done [#allocation6], 512
        $region44: #{tpu_custom_call.1} parent=35 // pred_fallthru
          _
        %s215 = sand.u32 %s30, 1
        %s216 = scalar_lea.sflag [#allocation3], %s215
        %s217 = sand.u32 %s30, 1
        %s218 = smul.addr %s217, 64
        %s219 = scalar_lea.vmem [#allocation2], %s218
        %p220 = pneg %p43
        %p221 = pneg %p40
        %p222 = pneg %p64
        %p223 = pneg %p61
        %p224 = pneg %p85
        %p225 = pneg %p82
        %p226 = pneg %p106
        %p227 = pneg %p103
        %p228 = pneg %p132
        %p229 = pneg %p129
        %s230 = sand.u32 %s119, 1
        %s231 = scalar_lea.sflag [#allocation4], %s230
        %s232 = sand.u32 %s119, 1
        %s233 = smul.addr %s232, 16
        %s234 = scalar_lea.vmem [#allocation7], %s233
        %v235 = vld [vmem:[#allocation5] sm:$0xff]
        %v236 = vld [vmem:[#allocation5 + $0x8] sm:$0xff]
        %v237 = vld [vmem:[#allocation5 + $0x10] sm:$0xff]
        %v238 = vld [vmem:[#allocation5 + $0x18] sm:$0xff]
        %v239 = vld [vmem:[%s2] sm:$0xff]
        %v240 = vld [vmem:[%s3] sm:$0xff]
        %v241 = vld [vmem:[%s204] sm:$0xff]
        %v242 = vld [vmem:[%s204 + $0x8] sm:$0xff]
        %v243 = vld [vmem:[%s204 + $0x10] sm:$0xff]
        %v244 = vld [vmem:[%s204 + $0x18] sm:$0xff]
        %v245 = vld [vmem:[%s204 + $0x20] sm:$0xff]
        %v246 = vld [vmem:[%s204 + $0x28] sm:$0xff]
        %v247 = vld [vmem:[%s204 + $0x30] sm:$0xff]
        %v248 = vld [vmem:[%s204 + $0x38] sm:$0xff]
        %vm249 = vcmask 130048
        %v251 = vsel %vm249, %v235, 0
        %v254 = vsel %vm249, %v241, 0
        %v257 = vsel %vm249, %v242, 0
        %259 = vmatpush.xpose.msra.mxu0 0.0
        %260 = vmatpush.xpose.msra.mxu0 0.0
        %261 = vmatpush.xpose.msra.mxu0 0.0
        %262 = vmatpush.xpose.msra.mxu0 0.0
        %263 = vmatpush.xpose.msra.mxu0 0.0
        %264 = vmatpush.xpose.msra.mxu0 0.0
        %265 = vmatpush.xpose.msra.mxu0 0.0
        %266 = vmatpush.xpose.msra.mxu0 0.0
        %267 = vmatpush.xpose.msra.mxu0 0.0
        %268 = vmatpush.xpose.msra.mxu0 0.0
        %269 = vmatpush.xpose.msra.mxu0 0.0
        %270 = vmatpush.xpose.msra.mxu0 0.0
        %271 = vmatpush.xpose.msra.mxu0 0.0
        %272 = vmatpush.xpose.msra.mxu0 0.0
        %273 = vmatpush.xpose.msra.mxu0 %v257
        %274 = vmatpush.xpose.msra.mxu0 %v254
        %275 = vmatmul.f32.gmra.mxu0 %v251
        %v276 = vpop.f32.mrf.mxu0
        %v277 = vadd.f32 0.0, %v276
        %278 = vdwg.mxu0
        %v280 = vsel %vm249, %v236, 0
        %v283 = vsel %vm249, %v243, 0
        %v286 = vsel %vm249, %v244, 0
        %288 = vmatpush.xpose.msra.mxu0 0.0
        %289 = vmatpush.xpose.msra.mxu0 0.0
        %290 = vmatpush.xpose.msra.mxu0 0.0
        %291 = vmatpush.xpose.msra.mxu0 0.0
        %292 = vmatpush.xpose.msra.mxu0 0.0
        %293 = vmatpush.xpose.msra.mxu0 0.0
        %294 = vmatpush.xpose.msra.mxu0 0.0
        %295 = vmatpush.xpose.msra.mxu0 0.0
        %296 = vmatpush.xpose.msra.mxu0 0.0
        %297 = vmatpush.xpose.msra.mxu0 0.0
        %298 = vmatpush.xpose.msra.mxu0 0.0
        %299 = vmatpush.xpose.msra.mxu0 0.0
        %300 = vmatpush.xpose.msra.mxu0 0.0
        %301 = vmatpush.xpose.msra.mxu0 0.0
        %302 = vmatpush.xpose.msra.mxu0 %v286
        %303 = vmatpush.xpose.msra.mxu0 %v283
        %304 = vmatmul.f32.gmra.mxu0 %v280
        %v305 = vpop.f32.mrf.mxu0
        %v306 = vadd.f32 0.0, %v305
        %307 = vdwg.mxu0
        %v309 = vsel %vm249, %v237, 0
        %v312 = vsel %vm249, %v245, 0
        %v315 = vsel %vm249, %v246, 0
        %317 = vmatpush.xpose.msra.mxu0 0.0
        %318 = vmatpush.xpose.msra.mxu0 0.0
        %319 = vmatpush.xpose.msra.mxu0 0.0
        %320 = vmatpush.xpose.msra.mxu0 0.0
        %321 = vmatpush.xpose.msra.mxu0 0.0
        %322 = vmatpush.xpose.msra.mxu0 0.0
        %323 = vmatpush.xpose.msra.mxu0 0.0
        %324 = vmatpush.xpose.msra.mxu0 0.0
        %325 = vmatpush.xpose.msra.mxu0 0.0
        %326 = vmatpush.xpose.msra.mxu0 0.0
        %327 = vmatpush.xpose.msra.mxu0 0.0
        %328 = vmatpush.xpose.msra.mxu0 0.0
        %329 = vmatpush.xpose.msra.mxu0 0.0
        %330 = vmatpush.xpose.msra.mxu0 0.0
        %331 = vmatpush.xpose.msra.mxu0 %v315
        %332 = vmatpush.xpose.msra.mxu0 %v312
        %333 = vmatmul.f32.gmra.mxu0 %v309
        %v334 = vpop.f32.mrf.mxu0
        %v335 = vadd.f32 0.0, %v334
        %336 = vdwg.mxu0
        %v338 = vsel %vm249, %v238, 0
        %v341 = vsel %vm249, %v247, 0
        %v344 = vsel %vm249, %v248, 0
        %346 = vmatpush.xpose.msra.mxu0 0.0
        %347 = vmatpush.xpose.msra.mxu0 0.0
        %348 = vmatpush.xpose.msra.mxu0 0.0
        %349 = vmatpush.xpose.msra.mxu0 0.0
        %350 = vmatpush.xpose.msra.mxu0 0.0
        %351 = vmatpush.xpose.msra.mxu0 0.0
        %352 = vmatpush.xpose.msra.mxu0 0.0
        %353 = vmatpush.xpose.msra.mxu0 0.0
        %354 = vmatpush.xpose.msra.mxu0 0.0
        %355 = vmatpush.xpose.msra.mxu0 0.0
        %356 = vmatpush.xpose.msra.mxu0 0.0
        %357 = vmatpush.xpose.msra.mxu0 0.0
        %358 = vmatpush.xpose.msra.mxu0 0.0
        %359 = vmatpush.xpose.msra.mxu0 0.0
        %360 = vmatpush.xpose.msra.mxu0 %v344
        %361 = vmatpush.xpose.msra.mxu0 %v341
        %362 = vmatmul.f32.gmra.mxu0 %v338
        %v363 = vpop.f32.mrf.mxu0
        %v364 = vadd.f32 0.0, %v363
        %365 = vdwg.mxu0
        %v366 = vsel %vm249, %v277, 0.0
        %v367 = vsel %vm249, %v306, 0.0
        %v368 = vadd.f32 %v366, %v367
        %v369 = vsel %vm249, %v335, 0.0
        %v370 = vadd.f32 %v368, %v369
        %v371 = vsel %vm249, %v364, 0.0
        %v372 = vadd.f32 %v370, %v371
        %374 = vset.pattern.permute.xlu0 0
        %375 = vperm.xlu0 %374, %v240
        %v376 = vpop.permute.xlu0 %375
        %v378 = vadd.f32 %v372, %v376
        %vm379 = vcmask 523264
        %v381 = vsel %vm379, %v239, 0
        %383 = vmatpush.msra.mxu0 0.0
        %384 = vmatpush.msra.mxu0 0.0
        %385 = vmatpush.msra.mxu0 0.0
        %386 = vmatpush.msra.mxu0 0.0
        %387 = vmatpush.msra.mxu0 0.0
        %388 = vmatpush.msra.mxu0 0.0
        %389 = vmatpush.msra.mxu0 0.0
        %390 = vmatpush.msra.mxu0 0.0
        %391 = vmatpush.msra.mxu0 %v248
        %392 = vmatpush.msra.mxu0 %v247
        %393 = vmatpush.msra.mxu0 %v246
        %394 = vmatpush.msra.mxu0 %v245
        %395 = vmatpush.msra.mxu0 %v244
        %396 = vmatpush.msra.mxu0 %v243
        %397 = vmatpush.msra.mxu0 %v242
        %398 = vmatpush.msra.mxu0 %v241
        %399 = vmatmul.f32.gmra.mxu0 %v381
        %v400 = vpop.f32.mrf.mxu0
        %v401 = vadd.f32 0.0, %v400
        %402 = vdwg.mxu0
        %404 = vset.pattern.permute.xlu0 0
        %405 = vperm.xlu0 %404, %v378
        %v406 = vpop.permute.xlu0 %405
        %v408 = vadd.f32 %v406, %v401
        %409 = vset.pattern.permute.xlu0 1
        %410 = vperm.xlu0 %409, %v378
        %v411 = vpop.permute.xlu0 %410
        %v413 = vadd.f32 %v411, %v401
        %414 = vset.pattern.permute.xlu0 2
        %415 = vperm.xlu0 %414, %v378
        %v416 = vpop.permute.xlu0 %415
        %v418 = vadd.f32 %v416, %v401
        %419 = vset.pattern.permute.xlu0 3
        %420 = vperm.xlu0 %419, %v378
        %v421 = vpop.permute.xlu0 %420
        %v423 = vadd.f32 %v421, %v401
        %424 = vset.pattern.permute.xlu0 4
        %425 = vperm.xlu0 %424, %v378
        %v426 = vpop.permute.xlu0 %425
        %v428 = vadd.f32 %v426, %v401
        %429 = vset.pattern.permute.xlu0 5
        %430 = vperm.xlu0 %429, %v378
        %v431 = vpop.permute.xlu0 %430
        %v433 = vadd.f32 %v431, %v401
        %434 = vset.pattern.permute.xlu0 6
        %435 = vperm.xlu0 %434, %v378
        %v436 = vpop.permute.xlu0 %435
        %v438 = vadd.f32 %v436, %v401
        %439 = vset.pattern.permute.xlu0 7
        %440 = vperm.xlu0 %439, %v378
        %v441 = vpop.permute.xlu0 %440
        %v443 = vadd.f32 %v441, %v401
        %444 = vset.pattern.permute.xlu0 8
        %445 = vperm.xlu0 %444, %v378
        %v446 = vpop.permute.xlu0 %445
        %v448 = vadd.f32 %v446, %v401
        %449 = vset.pattern.permute.xlu0 9
        %450 = vperm.xlu0 %449, %v378
        %v451 = vpop.permute.xlu0 %450
        %v453 = vadd.f32 %v451, %v401
        %454 = vset.pattern.permute.xlu0 10
        %455 = vperm.xlu0 %454, %v378
        %v456 = vpop.permute.xlu0 %455
        %v458 = vadd.f32 %v456, %v401
        %459 = vset.pattern.permute.xlu0 11
        %460 = vperm.xlu0 %459, %v378
        %v461 = vpop.permute.xlu0 %460
        %v463 = vadd.f32 %v461, %v401
        %464 = vset.pattern.permute.xlu0 12
        %465 = vperm.xlu0 %464, %v378
        %v466 = vpop.permute.xlu0 %465
        %v468 = vadd.f32 %v466, %v401
        %469 = vset.pattern.permute.xlu0 13
        %470 = vperm.xlu0 %469, %v378
        %v471 = vpop.permute.xlu0 %470
        %v473 = vadd.f32 %v471, %v401
        %474 = vset.pattern.permute.xlu0 14
        %475 = vperm.xlu0 %474, %v378
        %v476 = vpop.permute.xlu0 %475
        %v478 = vadd.f32 %v476, %v401
        %479 = vset.pattern.permute.xlu0 15
        %480 = vperm.xlu0 %479, %v378
        %v481 = vpop.permute.xlu0 %480
        %v483 = vadd.f32 %v481, %v401
        %485 = vrot.lane.b32.xlu0 %v413, 16
        %v486 = vpop.permute.xlu0 %485
        %489 = vrot.lane.b32.xlu0 %v418, 32
        %v490 = vpop.permute.xlu0 %489
        %493 = vrot.lane.b32.xlu0 %v423, 48
        %v494 = vpop.permute.xlu0 %493
        %497 = vrot.lane.b32.xlu0 %v428, 64
        %v498 = vpop.permute.xlu0 %497
        %501 = vrot.lane.b32.xlu0 %v433, 80
        %v502 = vpop.permute.xlu0 %501
        %505 = vrot.lane.b32.xlu0 %v438, 96
        %v506 = vpop.permute.xlu0 %505
        %509 = vrot.lane.b32.xlu0 %v443, 112
        %v510 = vpop.permute.xlu0 %509
        %513 = vrot.lane.b32.xlu0 %v453, 16
        %v514 = vpop.permute.xlu0 %513
        %517 = vrot.lane.b32.xlu0 %v458, 32
        %v518 = vpop.permute.xlu0 %517
        %521 = vrot.lane.b32.xlu0 %v463, 48
        %v522 = vpop.permute.xlu0 %521
        %525 = vrot.lane.b32.xlu0 %v468, 64
        %v526 = vpop.permute.xlu0 %525
        %529 = vrot.lane.b32.xlu0 %v473, 80
        %v530 = vpop.permute.xlu0 %529
        %533 = vrot.lane.b32.xlu0 %v478, 96
        %v534 = vpop.permute.xlu0 %533
        %537 = vrot.lane.b32.xlu0 %v483, 112
        %v538 = vpop.permute.xlu0 %537
        %v540 = vsel %vm249, %v408, %v486
        %vm541 = vcmask 261120
        %v542 = vsel %vm541, %v540, %v490
        %vm543 = vcmask 392192
        %v544 = vsel %vm543, %v542, %v494
        %v545 = vsel %vm379, %v544, %v498
        %vm546 = vcmask 654336
        %v547 = vsel %vm546, %v545, %v502
        %vm548 = vcmask 785408
        %v549 = vsel %vm548, %v547, %v506
        %vm550 = vcmask 916480
        %v551 = vsel %vm550, %v549, %v510
        %v552 = vsel %vm249, %v448, %v514
        %v553 = vsel %vm541, %v552, %v518
        %v554 = vsel %vm543, %v553, %v522
        %v555 = vsel %vm379, %v554, %v526
        %v556 = vsel %vm546, %v555, %v530
        %v557 = vsel %vm548, %v556, %v534
        %v558 = vsel %vm550, %v557, %v538
        %559 = vst [vmem:[%s234] sm:$0xff] %v551
        %560 = vst [vmem:[%s234 + $0x8] sm:$0xff] %v558
        %s561 = sand.u32 %s119, 1
        %s562 = scalar_lea.sflag [#allocation4], %s561
        %s563 = sand.u32 %s119, 1
        %s564 = smul.addr %s563, 16
        %s565 = scalar_lea.vmem [#allocation7], %s564
        // Predicated region
        $region45: #{tpu_custom_call.1} parent=35 // pred_check
          %p566 = pneg %p129
        $region46: #{tpu_custom_call.1} parent=35 // pred_check_branch
          %568 = sbr.rel (%p566) target = $region48
        $region47: #{tpu_custom_call.1} parent=35 // pred_region
          %570 = vsyncadd %s562, 0
          %s571 = smul.addr %s22, 2
          %s572 = smul.addr %s571, 8
          %s573 = scalar_lea.hbm %s4, %s572
          %s575 = sshll.u32 %s565, 4
          %s576 = int_to_ptr.vmem [resolvable:$true] %s575
          %s577 = sshll.u32 %s573, 4
          %s578 = int_to_ptr.hbm [resolvable:$true] %s577
          %580 = dma.vmem_to_hbm [thread:$0]  %s576, 256, %s578, %s562
        $region48: #{tpu_custom_call.1} parent=35 // pred_fallthru
          _
      $region36: #{tpu_custom_call.1} parent=5 // pred_fallthru
        _
      %p581 = scmp.le.s32.totalorder 2, %s17
      // Predicated region
      $region49: #{tpu_custom_call.1} parent=5 // pred_check
        %p582 = pneg %p581
      $region50: #{tpu_custom_call.1} parent=5 // pred_check_branch
        %584 = sbr.rel (%p582) target = $region52
      $region51: #{tpu_custom_call.1} parent=5 // pred_region
        %s585 = ssub.s32 %s17, 2
        // Predicated region
        $region53: #{tpu_custom_call.1} parent=51 // pred_check
          %p586 = pneg %p135
        $region54: #{tpu_custom_call.1} parent=51 // pred_check_branch
          %588 = sbr.rel (%p586) target = $region56
        $region55: #{tpu_custom_call.1} parent=51 // pred_region
          %s589 = sand.u32 %s120, 1
          %s590 = scalar_lea.sflag [#allocation4], %s589
          %s591 = sand.u32 %s120, 1
          %s592 = smul.addr %s591, 16
          %s593 = scalar_lea.vmem [#allocation7], %s592
          %595 = dma.done %s590, 256
        $region56: #{tpu_custom_call.1} parent=51 // pred_fallthru
          _
      $region52: #{tpu_custom_call.1} parent=5 // pred_fallthru
        _
    $region6: #{tpu_custom_call.1} parent=1 // loop_footer
      %s21 = sadd.s32 1, %s17
    $region7: #{tpu_custom_call.1} parent=1 // loop_footer_branch
      %16 = sbr.rel target = $region3
    $region8: #{tpu_custom_call.1} parent=1 // loop_exit
      _
    %596 = vsyncpa [#allocation3], 1
    %s597 = scalar_lea.sflag [#allocation3], 1
    %598 = vsyncpa %s597, 1
    %599 = vsyncpa [#allocation6], 1
    %600 = vsyncpa [#allocation4], 1
    %s601 = scalar_lea.sflag [#allocation4], 1
    %602 = vsyncpa %s601, 1

</llo_original>
